<compile_context>
chip_gen: v6e
topology: v6e:2x2x1
jax: 0.10.0
libtpu: 0.0.40
codegen_flags: <defaults>
</compile_context>

<pallas_src>
import math

import jax
import jax.numpy as jnp
from jax.experimental import pallas as pl
from jax.experimental.pallas import tpu as pltpu


def _vmem_capacity_bytes():
    try:
        return int(pltpu.get_tpu_info().vmem_capacity_bytes)
    except Exception:
        return 64 << 20  # conservative fallback (v7x per-TC physical VMEM)


def _make_se_att_kernel(hw_true):
    inv_hw = 1.0 / float(hw_true)

    def kernel(x_ref, w1t_ref, w2_ref, o_ref):
        # x_ref / o_ref: (bt, c, hw_pad) VMEM slabs.
        # w1t_ref: (c, c//r) == fc1.weight.T   (fc1.weight is (c//r, c))
        # w2_ref:  (c, c//r) == fc2.weight     (fc2.weight is (c, c//r))

        # Squeeze: global average pool over the (zero-padded) spatial lanes,
        # accumulated in f32 and divided by the TRUE h*w.
        x32 = x_ref[...].astype(jnp.float32)
        s = jnp.sum(x32, axis=-1, keepdims=True) * inv_hw          # (bt, c, 1)

        # Excitation FC1 (no bias) + ReLU:
        #   h1[b, k] = sum_j W1t[j, k] * s[b, j]
        w1t = w1t_ref[...].astype(jnp.float32)                      # (c, cr)
        h1 = jnp.sum(w1t[None, :, :] * s, axis=1, keepdims=True)    # (bt, 1, cr)
        h1 = jnp.maximum(h1, 0.0)

        # Excitation FC2 (no bias) + sigmoid:
        #   z[b, j] = sum_k W2[j, k] * h1[b, k]
        w2 = w2_ref[...].astype(jnp.float32)                        # (c, cr)
        z = jnp.sum(w2[None, :, :] * h1, axis=-1, keepdims=True)    # (bt, c, 1)
        scale = jax.nn.sigmoid(z)                                   # f32

        # Rescale: re-read the slab and multiply in the input dtype (avoids a
        # slab-wide f32 upcast of the only slab-sized operation on bf16 data).
        o_ref[...] = (x_ref[...] * scale.astype(x_ref.dtype)).astype(o_ref.dtype)

    return kernel


def se_att(x, fc1_weight_t, fc2_weight):
    """Pallas equivalent of SE_Att.forward.

    x:            (b, c, h, w)
    fc1_weight_t: (c, c//ratio)  -- fc1.weight.T, transposed ONCE at init time
    fc2_weight:   (c, c//ratio)  -- PyTorch nn.Linear weight layout (out, in)
    returns:      (b, c, h, w)
    """
    b, c, h, w = x.shape
    c1, cr = fc1_weight_t.shape
    assert c1 == c
    assert fc2_weight.shape == (c, cr)

    hw = h * w
    hw_pad = ((hw + 127) // 128) * 128
    x_flat = x.reshape(b, c, hw)
    if hw_pad != hw:
        # Zero-pad so stores are full-lane; zeros do not bias the pooled sum.
        x_flat = jnp.pad(x_flat, ((0, 0), (0, 0), (0, hw_pad - hw)))

    # ---- Batch blocking based on the VMEM budget ----------------------------
    itemsize = jnp.dtype(x.dtype).itemsize
    w_itemsize = jnp.dtype(fc1_weight_t.dtype).itemsize
    cap = _vmem_capacity_bytes()
    budget = (cap * 3) // 4
    per_image = 4 * c * hw_pad * itemsize            # in + out, double-buffered
    fixed = 2 * 2 * c * cr * w_itemsize              # both weights, 2 buffers
    bt = int(max(1, min(b, (budget - fixed) // max(per_image, 1))))

    b_pad = ((b + bt - 1) // bt) * bt
    if b_pad != b:
        x_flat = jnp.pad(x_flat, ((0, b_pad - b), (0, 0), (0, 0)))

    vmem_limit = int(min(cap, max(fixed + bt * per_image + (2 << 20), 32 << 20)))

    grid = (b_pad // bt,)
    kernel = _make_se_att_kernel(hw)

    out_flat = pl.pallas_call(
        kernel,
        out_shape=jax.ShapeDtypeStruct((b_pad, c, hw_pad), x.dtype),
        grid_spec=pltpu.PrefetchScalarGridSpec(
            num_scalar_prefetch=0,
            grid=grid,
            in_specs=[
                # one (bt, c, hw_pad) slab per grid step
                pl.BlockSpec((bt, c, hw_pad), lambda i: (i, 0, 0)),
                # small weight blocks, constant across the grid (stay resident)
                pl.BlockSpec((c, cr), lambda i: (0, 0)),
                pl.BlockSpec((c, cr), lambda i: (0, 0)),
            ],
            out_specs=pl.BlockSpec((bt, c, hw_pad), lambda i: (i, 0, 0)),
        ),
        compiler_params=pltpu.CompilerParams(
            dimension_semantics=("parallel",),
            vmem_limit_bytes=vmem_limit,
        ),
    )(x_flat, fc1_weight_t, fc2_weight)

    out = out_flat[:b, :, :hw].reshape(b, c, h, w)
    return out


def _reference_se_att(x, fc1_weight, fc2_weight):
    # Pure-JAX reference mirroring the PyTorch module.
    s = jnp.mean(x, axis=(2, 3))                              # (b, c)
    h1 = jnp.maximum(s @ fc1_weight.T, 0.0)                   # (b, c//r)
    scale = jax.nn.sigmoid(h1 @ fc2_weight.T)                 # (b, c)
    return x * scale[:, :, None, None]


if __name__ == "__main__":
    key = jax.random.PRNGKey(0)
    k1, k2, k3 = jax.random.split(key, 3)

    # Small shapes consistent with the module: in_channel=16, ratio=4.
    b, c, h, w, ratio = 2, 16, 16, 16, 4
    cr = c // ratio

    x = jax.random.normal(k1, (b, c, h, w), dtype=jnp.float32)
    bound1 = 1.0 / math.sqrt(c)
    fc1_weight = jax.random.uniform(
        k2, (cr, c), dtype=jnp.float32, minval=-bound1, maxval=bound1)
    bound2 = 1.0 / math.sqrt(cr)
    fc2_weight = jax.random.uniform(
        k3, (c, cr), dtype=jnp.float32, minval=-bound2, maxval=bound2)

    # Parameter-init-time transpose (hoisted out of the forward pass).
    fc1_weight_t = jnp.asarray(fc1_weight.T)

    out = jax.block_until_ready(se_att(x, fc1_weight_t, fc2_weight))
    ref = _reference_se_att(x, fc1_weight, fc2_weight)

    if out.shape == ref.shape and jnp.allclose(out, ref, atol=1e-5, rtol=1e-5):
        print("KERNEL_OK")
    else:
        print("MISMATCH max_abs_err=", float(jnp.max(jnp.abs(out - ref))))
</pallas_src>

<mosaic_0001>
module attributes {stable_mosaic.version = 11 : i64} {
  func.func @kernel(%arg0: i32, %arg1: memref<2x16x256xf32, #tpu.memory_space<vmem>>, %arg2: memref<16x4xf32, #tpu.memory_space<vmem>>, %arg3: memref<16x4xf32, #tpu.memory_space<vmem>>, %arg4: memref<2x16x256xf32, #tpu.memory_space<vmem>>) attributes {dimension_semantics = [#tpu.dimension_semantics<parallel>], iteration_bounds = array<i64: 1>, scalar_prefetch = 0 : i64, scratch_operands = 0 : i64, tpu.core_type = #tpu.core_type<tc>, window_params = [{transform_indices = @transform_0, window_bounds = array<i64: 2, 16, 256>}, {pipeline_mode = #tpu.pipeline_mode<synchronous>, transform_indices = @transform_1, window_bounds = array<i64: 16, 4>}, {pipeline_mode = #tpu.pipeline_mode<synchronous>, transform_indices = @transform_2, window_bounds = array<i64: 16, 4>}, {transform_indices = @transform_3, window_bounds = array<i64: 2, 16, 256>}]} {
    %c0 = arith.constant 0 : index
    %c0_0 = arith.constant 0 : index
    %c0_1 = arith.constant 0 : index
    %0 = vector.load %arg1[%c0, %c0_0, %c0_1] : memref<2x16x256xf32, #tpu.memory_space<vmem>>, vector<2x16x256xf32>
    %cst = arith.constant dense<0.000000e+00> : vector<2x16xf32>
    %1 = vector.multi_reduction <add>, %0, %cst [2] : vector<2x16x256xf32> to vector<2x16xf32>
    %2 = vector.shape_cast %1 : vector<2x16xf32> to vector<2x16x1xf32>
    %cst_2 = arith.constant 3.906250e-03 : f32
    %3 = vector.broadcast %cst_2 : f32 to vector<2x16x1xf32>
    %4 = arith.mulf %2, %3 : vector<2x16x1xf32>
    %c0_3 = arith.constant 0 : index
    %c0_4 = arith.constant 0 : index
    %5 = vector.load %arg2[%c0_3, %c0_4] : memref<16x4xf32, #tpu.memory_space<vmem>>, vector<16x4xf32>
    %6 = vector.shape_cast %5 : vector<16x4xf32> to vector<1x16x4xf32>
    %7 = vector.broadcast %6 : vector<1x16x4xf32> to vector<2x16x4xf32>
    %8 = vector.broadcast %4 : vector<2x16x1xf32> to vector<2x16x4xf32>
    %9 = arith.mulf %7, %8 : vector<2x16x4xf32>
    %cst_5 = arith.constant dense<0.000000e+00> : vector<2x4xf32>
    %10 = vector.multi_reduction <add>, %9, %cst_5 [1] : vector<2x16x4xf32> to vector<2x4xf32>
    %11 = vector.shape_cast %10 : vector<2x4xf32> to vector<2x1x4xf32>
    %cst_6 = arith.constant 0.000000e+00 : f32
    %12 = vector.broadcast %cst_6 : f32 to vector<2x1x4xf32>
    %13 = arith.maximumf %11, %12 : vector<2x1x4xf32>
    %c0_7 = arith.constant 0 : index
    %c0_8 = arith.constant 0 : index
    %14 = vector.load %arg3[%c0_7, %c0_8] : memref<16x4xf32, #tpu.memory_space<vmem>>, vector<16x4xf32>
    %15 = vector.shape_cast %14 : vector<16x4xf32> to vector<1x16x4xf32>
    %16 = vector.broadcast %15 : vector<1x16x4xf32> to vector<2x16x4xf32>
    %17 = vector.broadcast %13 : vector<2x1x4xf32> to vector<2x16x4xf32>
    %18 = arith.mulf %16, %17 : vector<2x16x4xf32>
    %cst_9 = arith.constant dense<0.000000e+00> : vector<2x16xf32>
    %19 = vector.multi_reduction <add>, %18, %cst_9 [2] : vector<2x16x4xf32> to vector<2x16xf32>
    %20 = vector.shape_cast %19 : vector<2x16xf32> to vector<2x16x1xf32>
    %21 = arith.negf %20 : vector<2x16x1xf32>
    %22 = math.exp %21 : vector<2x16x1xf32>
    %cst_10 = arith.constant 1.000000e+00 : f32
    %23 = vector.broadcast %cst_10 : f32 to vector<2x16x1xf32>
    %24 = arith.addf %23, %22 : vector<2x16x1xf32>
    %25 = arith.divf %23, %24 : vector<2x16x1xf32>
    %c0_11 = arith.constant 0 : index
    %c0_12 = arith.constant 0 : index
    %c0_13 = arith.constant 0 : index
    %26 = vector.load %arg1[%c0_11, %c0_12, %c0_13] : memref<2x16x256xf32, #tpu.memory_space<vmem>>, vector<2x16x256xf32>
    %27 = vector.broadcast %25 : vector<2x16x1xf32> to vector<2x16x256xf32>
    %28 = arith.mulf %26, %27 : vector<2x16x256xf32>
    %c0_14 = arith.constant 0 : index
    %c0_15 = arith.constant 0 : index
    %c0_16 = arith.constant 0 : index
    %29 = vector.load %arg4[%c0_14, %c0_15, %c0_16] : memref<2x16x256xf32, #tpu.memory_space<vmem>>, vector<2x16x256xf32>
    tpu.vector_store %arg4[%c0_14, %c0_15, %c0_16], %28 {strides = array<i32>} : memref<2x16x256xf32, #tpu.memory_space<vmem>>, vector<2x16x256xf32>,
    return
  }
  func.func @transform_0(%arg0: i32) -> (i32, i32, i32) {
    %c0_i32 = arith.constant 0 : i32
    %c0_i32_0 = arith.constant 0 : i32
    %c0_i32_1 = arith.constant 0 : i32
    return %arg0, %c0_i32, %c0_i32_0 : i32, i32, i32
  }
  func.func @transform_1(%arg0: i32) -> (i32, i32) {
    %c0_i32 = arith.constant 0 : i32
    %c0_i32_0 = arith.constant 0 : i32
    %c0_i32_1 = arith.constant 0 : i32
    return %c0_i32, %c0_i32_0 : i32, i32
  }
  func.func @transform_2(%arg0: i32) -> (i32, i32) {
    %c0_i32 = arith.constant 0 : i32
    %c0_i32_0 = arith.constant 0 : i32
    %c0_i32_1 = arith.constant 0 : i32
    return %c0_i32, %c0_i32_0 : i32, i32
  }
  func.func @transform_3(%arg0: i32) -> (i32, i32, i32) {
    %c0_i32 = arith.constant 0 : i32
    %c0_i32_0 = arith.constant 0 : i32
    %c0_i32_1 = arith.constant 0 : i32
    return %arg0, %c0_i32, %c0_i32_0 : i32, i32, i32
  }
}

</mosaic_0001>

<llo_original>
// kernel: tpu_custom_call.1
$region0: #{tpu_custom_call.1}
  #allocation0 [shape = 'u32[]', space=smem, size = 0x4, offset = 0x4, fixed_abs, tag = 'smem constant byte address 0x4 - core index']
  #allocation1 [shape = 'u32[144,128]{1,0:T(1,128)}', space=vmem, size = 0x12000, scoped, tag = 'internal scratch']
  %s0 = inlined_call_operand.hbm [shape: f32[2,16,256], index: 0, kind: input, shape index: {}]
  %s1 = inlined_call_operand.vmem [shape: f32[16,4], index: 1, kind: input, shape index: {}]
  %s2 = inlined_call_operand.vmem [shape: f32[16,4], index: 2, kind: input, shape index: {}]
  %s3 = inlined_call_operand.hbm [shape: f32[2,16,256], index: 3, kind: output, shape index: {}]
  %s4 = sld [smem:[#allocation0]]
  $region26: #{tpu_custom_call.1} parent=0
    _
  %s6 = ssub.s32 1, %s4
  %s7 = scalar_select 0, %s6, %s4
  $region1: #{tpu_custom_call.1} parent=0
    #allocation2 [shape = 'u8[32768]{0}', space=vmem, size = 0x8000, scoped, tag = 'input window, operand 0, single buffered']
    #allocation3 [shape = 's32[1]{0}', space=sflag, size = 0x4, scoped, tag = 'scoped memory for tpu_custom_call.1']
    #allocation4 [shape = 's32[1]{0}', space=sflag, size = 0x4, scoped, tag = 'scoped memory for tpu_custom_call.1']
    #allocation5 [shape = 'u8[32768]{0}', space=vmem, size = 0x8000, scoped, tag = 'output window, operand 0, single buffered']
    %8 = vsyncpa [#allocation3], 0
    %9 = vsyncpa [#allocation4], 0
    // Predicated region
    $region2: #{tpu_custom_call.1} parent=1 // pred_check
      _
    $region3: #{tpu_custom_call.1} parent=1 // pred_check_branch
      %11 = sbr.rel (0) target = $region5
    $region4: #{tpu_custom_call.1} parent=1 // pred_region
      %s13 = ssub.s32 1024, 1024
      %14 = vsyncadd [#allocation3], %s13
      %s15 = sshll.u32 [#allocation2], 4
      %s16 = int_to_ptr.vmem [resolvable:$true] %s15
      %21 = dma.hbm_to_vmem [thread:$0]  %s0, 1024, %s16, [#allocation3], 256, 256, 16
    $region5: #{tpu_custom_call.1} parent=1 // pred_fallthru
      _
    // Predicated region
    $region6: #{tpu_custom_call.1} parent=1 // pred_check
      _
    $region7: #{tpu_custom_call.1} parent=1 // pred_check_branch
      %23 = sbr.rel (0) target = $region9
    $region8: #{tpu_custom_call.1} parent=1 // pred_region
      _
    $region9: #{tpu_custom_call.1} parent=1 // pred_fallthru
      _
    // Predicated region
    $region10: #{tpu_custom_call.1} parent=1 // pred_check
      _
    $region11: #{tpu_custom_call.1} parent=1 // pred_check_branch
      %25 = sbr.rel (0) target = $region13
    $region12: #{tpu_custom_call.1} parent=1 // pred_region
      _
    $region13: #{tpu_custom_call.1} parent=1 // pred_fallthru
      _
    // Predicated region
    $region14: #{tpu_custom_call.1} parent=1 // pred_check
      _
    $region15: #{tpu_custom_call.1} parent=1 // pred_check_branch
      %27 = sbr.rel (0) target = $region17
    $region16: #{tpu_custom_call.1} parent=1 // pred_region
      %28 = dma.done [#allocation3], 1024
    $region17: #{tpu_custom_call.1} parent=1 // pred_fallthru
      _
    %v29 = vld [vmem:[#allocation2] sm:$0xff]
    %v30 = vld [vmem:[#allocation2 + $0x8] sm:$0xff]
    %v31 = vld [vmem:[#allocation2 + $0x10] sm:$0xff]
    %v32 = vld [vmem:[#allocation2 + $0x18] sm:$0xff]
    %v33 = vld [vmem:[#allocation2 + $0x20] sm:$0xff]
    %v34 = vld [vmem:[#allocation2 + $0x28] sm:$0xff]
    %v35 = vld [vmem:[#allocation2 + $0x30] sm:$0xff]
    %v36 = vld [vmem:[#allocation2 + $0x38] sm:$0xff]
    %v37 = vadd.f32 %v29, %v30
    %38 = vadd.xlane.f32.xlu0 %v37
    %v39 = vpop.xlane.xlu0 %38
    %v40 = vadd.f32 %v31, %v32
    %41 = vadd.xlane.f32.xlu0 %v40
    %v42 = vpop.xlane.xlu0 %41
    %v43 = vadd.f32 %v33, %v34
    %44 = vadd.xlane.f32.xlu0 %v43
    %v45 = vpop.xlane.xlu0 %44
    %v46 = vadd.f32 %v35, %v36
    %47 = vadd.xlane.f32.xlu0 %v46
    %v48 = vpop.xlane.xlu0 %47
    %v49 = vmul.f32 %v39, 0.00390625
    %v50 = vmul.f32 %v42, 0.00390625
    %v51 = vmul.f32 %v45, 0.00390625
    %v52 = vmul.f32 %v48, 0.00390625
    %v53 = vld [vmem:[%s1] sm:$0xff]
    %v54 = vld [vmem:[%s1 + $0x8] sm:$0xff]
    %v55 = vmul.f32 %v53, %v49
    %v56 = vmul.f32 %v54, %v50
    %v57 = vmul.f32 %v53, %v51
    %v58 = vmul.f32 %v54, %v52
    %vm59 = vcmask 31744
    %v60 = vsel %vm59, %v55, 0.0
    %v61 = vsel %vm59, %v56, 0.0
    %v62 = vadd.f32 %v60, %v61
    %v63 = vrot.slane %v62, 4
    %v64 = vadd.f32 %v62, %v63
    %v65 = vrot.slane %v64, 2
    %v66 = vadd.f32 %v64, %v65
    %v67 = vrot.slane %v66, 1
    %v68 = vadd.f32 %v66, %v67
    %v69 = vsel %vm59, %v57, 0.0
    %v70 = vsel %vm59, %v58, 0.0
    %v71 = vadd.f32 %v69, %v70
    %v72 = vrot.slane %v71, 4
    %v73 = vadd.f32 %v71, %v72
    %v74 = vrot.slane %v73, 2
    %v75 = vadd.f32 %v73, %v74
    %v76 = vrot.slane %v75, 1
    %v77 = vadd.f32 %v75, %v76
    %v78 = vmax.f32 %v68, 0.0
    %v79 = vmax.f32 %v77, 0.0
    %v80 = vld [vmem:[%s2] sm:$0xff]
    %v81 = vld [vmem:[%s2 + $0x8] sm:$0xff]
    %v82 = vmul.f32 %v80, %v78
    %v83 = vmul.f32 %v81, %v78
    %v84 = vmul.f32 %v80, %v79
    %v85 = vmul.f32 %v81, %v79
    %v86 = vsel %vm59, %v82, 0.0
    %87 = vadd.xlane.f32.xlu0 %v86
    %v88 = vpop.xlane.xlu0 %87
    %v89 = vsel %vm59, %v83, 0.0
    %90 = vadd.xlane.f32.xlu0 %v89
    %v91 = vpop.xlane.xlu0 %90
    %v92 = vsel %vm59, %v84, 0.0
    %93 = vadd.xlane.f32.xlu0 %v92
    %v94 = vpop.xlane.xlu0 %93
    %v95 = vsel %vm59, %v85, 0.0
    %96 = vadd.xlane.f32.xlu0 %v95
    %v97 = vpop.xlane.xlu0 %96
    %v98 = vxor.u32 %v88, 2147483648
    %v99 = vxor.u32 %v91, 2147483648
    %v100 = vxor.u32 %v94, 2147483648
    %v101 = vxor.u32 %v97, 2147483648
    %v102 = vmul.f32 %v98, 1.442695
    %v103 = vpow.pop %v102
    %v104 = vmul.f32 %v99, 1.442695
    %v105 = vpow.pop %v104
    %v106 = vmul.f32 %v100, 1.442695
    %v107 = vpow.pop %v106
    %v108 = vmul.f32 %v101, 1.442695
    %v109 = vpow.pop %v108
    %v110 = vadd.f32 %v103, 1.0
    %v111 = vadd.f32 %v105, 1.0
    %v112 = vadd.f32 %v107, 1.0
    %v113 = vadd.f32 %v109, 1.0
    %v114 = vrcp.pop %v110
    %v115 = vmul.f32 1.0, %v114
    %v116 = vrcp.pop %v111
    %v117 = vmul.f32 1.0, %v116
    %v118 = vrcp.pop %v112
    %v119 = vmul.f32 1.0, %v118
    %v120 = vrcp.pop %v113
    %v121 = vmul.f32 1.0, %v120
    %v122 = vmul.f32 %v29, %v115
    %v123 = vmul.f32 %v30, %v115
    %v124 = vmul.f32 %v31, %v117
    %v125 = vmul.f32 %v32, %v117
    %v126 = vmul.f32 %v33, %v119
    %v127 = vmul.f32 %v34, %v119
    %v128 = vmul.f32 %v35, %v121
    %v129 = vmul.f32 %v36, %v121
    %130 = vst [vmem:[#allocation5] sm:$0xff] %v122
    %131 = vst [vmem:[#allocation5 + $0x8] sm:$0xff] %v123
    %132 = vst [vmem:[#allocation5 + $0x10] sm:$0xff] %v124
    %133 = vst [vmem:[#allocation5 + $0x18] sm:$0xff] %v125
    %134 = vst [vmem:[#allocation5 + $0x20] sm:$0xff] %v126
    %135 = vst [vmem:[#allocation5 + $0x28] sm:$0xff] %v127
    %136 = vst [vmem:[#allocation5 + $0x30] sm:$0xff] %v128
    %137 = vst [vmem:[#allocation5 + $0x38] sm:$0xff] %v129
    // Predicated region
    $region18: #{tpu_custom_call.1} parent=1 // pred_check
      _
    $region19: #{tpu_custom_call.1} parent=1 // pred_check_branch
      %139 = sbr.rel (0) target = $region21
    $region20: #{tpu_custom_call.1} parent=1 // pred_region
      %s141 = ssub.s32 1024, 1024
      %142 = vsyncadd [#allocation4], %s141
      %s143 = sshll.u32 [#allocation5], 4
      %s144 = int_to_ptr.vmem [resolvable:$true] %s143
      %149 = dma.vmem_to_hbm [thread:$0]  %s144, 1024, %s3, [#allocation4], 256, 256, 16
    $region21: #{tpu_custom_call.1} parent=1 // pred_fallthru
      _
    // Predicated region
    $region22: #{tpu_custom_call.1} parent=1 // pred_check
      _
    $region23: #{tpu_custom_call.1} parent=1 // pred_check_branch
      %151 = sbr.rel (0) target = $region25
    $region24: #{tpu_custom_call.1} parent=1 // pred_region
      %152 = dma.done [#allocation4], 1024
    $region25: #{tpu_custom_call.1} parent=1 // pred_fallthru
      _
    %153 = vsyncpa [#allocation3], 1
    %154 = vsyncpa [#allocation4], 1

</llo_original>
